<compile_context>
chip_gen: v6e
topology: v6e:2x2x1
jax: 0.10.0
libtpu: 0.0.40
codegen_flags: <defaults>
</compile_context>

<pallas_src>
import jax
import jax.numpy as jnp
from jax.experimental import pallas as pl
from jax.experimental.pallas import tpu as pltpu


# --------------------------------------------------------------------------
# Kernels
# --------------------------------------------------------------------------

def _row_blend_kernel(fd_ref, off_ref, out_ref):
    # fd_ref:  (1, L)   fixed diagonal values (resident across grid steps)
    # off_ref: (TM, L)  row tile of the off-diagonal (adjacency) matrix
    # out_ref: (TM, L)  row tile of the output
    tm, L = out_ref.shape
    row_base = pl.program_id(0) * tm
    rows = jax.lax.broadcasted_iota(jnp.int32, (tm, L), 0) + row_base
    cols = jax.lax.broadcasted_iota(jnp.int32, (tm, L), 1)
    # Element (i, j): fd[j] on the diagonal (i == j), off[i, j] elsewhere.
    out_ref[...] = jnp.where(rows == cols, fd_ref[...], off_ref[...])


def _diag_block_kernel(fd_ref, off_ref, out_ref):
    # Operates only on (TB, TB) blocks sitting on the global diagonal (block
    # index (i, i)), so the local row==col predicate IS the global diagonal.
    tb = out_ref.shape[0]
    rows = jax.lax.broadcasted_iota(jnp.int32, (tb, tb), 0)
    cols = jax.lax.broadcasted_iota(jnp.int32, (tb, tb), 1)
    out_ref[...] = jnp.where(rows == cols, fd_ref[...], off_ref[...])


# --------------------------------------------------------------------------
# Tiling helpers
# --------------------------------------------------------------------------

def _sublane_multiple(dtype):
    itemsize = jnp.dtype(dtype).itemsize
    return {4: 8, 2: 16, 1: 32}.get(itemsize, 8)


def _round_down(x, m):
    return max(m, (x // m) * m)


# --------------------------------------------------------------------------
# Wrappers
# --------------------------------------------------------------------------

def custom_matrix_forward(fixed_diagonal, off_diagonal, *,
                          max_rows_per_tile=None, min_pallas_dim=128):
    """CustomMatrix.forward(): diagonal <- fixed_diagonal, elsewhere off_diagonal."""
    L = off_diagonal.shape[0]
    dtype = off_diagonal.dtype
    fd = fixed_diagonal.astype(dtype)

    if L < min_pallas_dim:
        # Typical tiny label counts: lane dim < 128 forces masked partial
        # stores and the pallas_call fixed overhead dominates -> plain XLA.
        rows = jax.lax.broadcasted_iota(jnp.int32, (L, L), 0)
        cols = jax.lax.broadcasted_iota(jnp.int32, (L, L), 1)
        return jnp.where(rows == cols, fd[None, :], off_diagonal)

    itemsize = jnp.dtype(dtype).itemsize
    sub = _sublane_multiple(dtype)

    # ~2 MiB per block keeps 2x(in)+2x(out) double-buffered blocks (~8 MiB)
    # inside even v5e's 16 MiB scoped-VMEM default while staying in the
    # near-roofline tile regime.
    bytes_budget = 2 * 1024 * 1024
    rows_by_bytes = _round_down(bytes_budget // max(1, L * itemsize), sub)
    # Guarantee a multi-step grid (~8+ tiles when L permits): enables DMA
    # overlap via double-buffering and the v7x megacore split on the row axis.
    rows_for_steps = _round_down(max(L // 8, 1), sub)
    tm = min(512, rows_by_bytes, rows_for_steps)
    if max_rows_per_tile is not None:
        tm = min(tm, _round_down(max_rows_per_tile, sub))
    tm = max(sub, _round_down(tm, sub))

    grid = (pl.cdiv(L, tm),)  # ragged last tile is masked by Pallas

    in_block = tm * L * itemsize
    fd_bytes = L * itemsize
    vmem_limit = int(max(8 << 20, 4 * in_block + 2 * fd_bytes + (2 << 20)))

    return pl.pallas_call(
        _row_blend_kernel,
        out_shape=jax.ShapeDtypeStruct((L, L), dtype),
        grid=grid,
        in_specs=[
            # Constant block index -> stays resident in VMEM across steps.
            pl.BlockSpec((1, L), lambda i: (0, 0)),
            pl.BlockSpec((tm, L), lambda i: (i, 0)),
        ],
        out_specs=pl.BlockSpec((tm, L), lambda i: (i, 0)),
        compiler_params=pltpu.CompilerParams(
            dimension_semantics=("parallel",),
            vmem_limit_bytes=vmem_limit,
        ),
        cost_estimate=pl.CostEstimate(
            flops=L * L,
            transcendentals=0,
            bytes_accessed=2 * L * L * itemsize + L * itemsize,
        ),
    )(fd.reshape(1, L), off_diagonal)


def custom_matrix_update_diagonal_in_place(fixed_diagonal, off_diagonal, *, block=128):
    """O(L * block) variant: the output aliases off_diagonal and only the
    (block, block) diagonal tiles are visited/rewritten.  Pays off when the
    caller donates off_diagonal (jax.jit(..., donate_argnums=...)); otherwise
    XLA inserts a defensive copy and the traffic win evaporates (still correct).
    """
    L = off_diagonal.shape[0]
    dtype = off_diagonal.dtype
    fd = fixed_diagonal.astype(dtype).reshape(1, L)
    tb = block
    itemsize = jnp.dtype(dtype).itemsize
    grid = (pl.cdiv(L, tb),)
    vmem_limit = int(max(8 << 20, 4 * tb * tb * itemsize + 2 * L * itemsize + (2 << 20)))

    return pl.pallas_call(
        _diag_block_kernel,
        out_shape=jax.ShapeDtypeStruct((L, L), dtype),
        grid=grid,
        in_specs=[
            pl.BlockSpec((1, tb), lambda i: (0, i)),
            pl.BlockSpec((tb, tb), lambda i: (i, i)),
        ],
        out_specs=pl.BlockSpec((tb, tb), lambda i: (i, i)),
        input_output_aliases={1: 0},  # off_diagonal buffer IS the output
        compiler_params=pltpu.CompilerParams(
            dimension_semantics=("parallel",),
            vmem_limit_bytes=vmem_limit,
        ),
        cost_estimate=pl.CostEstimate(
            flops=L * tb,
            transcendentals=0,
            bytes_accessed=2 * L * tb * itemsize + L * itemsize,
        ),
    )(fd, off_diagonal)


def make_custom_matrix_params(adj_list, need_transpose=False):
    """Mirrors CustomMatrix.__init__ (the identity mask is generated in-kernel)."""
    num_labels = adj_list.shape[0]
    fixed_diagonal = jnp.ones((num_labels,), dtype=jnp.float32)
    adj = jnp.asarray(adj_list, dtype=jnp.float32)
    if need_transpose:
        adj = adj.T
    return fixed_diagonal, adj


def _reference(fixed_diagonal, off_diagonal):
    L = off_diagonal.shape[0]
    mask = jnp.eye(L, dtype=off_diagonal.dtype)
    return fixed_diagonal * mask + off_diagonal * (1.0 - mask)


if __name__ == "__main__":
    key = jax.random.PRNGKey(0)

    # Case 1: typical tiny label count -> XLA fast path (no pallas overhead).
    L0 = 8
    adj0 = jax.random.uniform(key, (L0, L0), dtype=jnp.float32)
    fd0, off0 = make_custom_matrix_params(adj0, need_transpose=False)
    out0 = jax.block_until_ready(custom_matrix_forward(fd0, off0))
    assert jnp.allclose(out0, _reference(fd0, off0), atol=1e-6), "mismatch (L=8)"

    # Case 2: larger L -> Pallas row-tiled kernel (8 grid steps at L=256).
    L1 = 256
    adj1 = jax.random.uniform(jax.random.PRNGKey(0), (L1, L1), dtype=jnp.float32)
    fd1, off1 = make_custom_matrix_params(adj1, need_transpose=True)
    out1 = jax.block_until_ready(custom_matrix_forward(fd1, off1))
    ref1 = _reference(fd1, off1)
    assert jnp.allclose(out1, ref1, atol=1e-6), "mismatch (L=256)"

    # Case 3: L not a multiple of the tile -> exercises cdiv / ragged last tile.
    L2 = 200
    adj2 = jax.random.uniform(jax.random.PRNGKey(1), (L2, L2), dtype=jnp.float32)
    fd2, off2 = make_custom_matrix_params(adj2, need_transpose=False)
    out2 = jax.block_until_ready(custom_matrix_forward(fd2, off2))
    assert jnp.allclose(out2, _reference(fd2, off2), atol=1e-6), "mismatch (L=200)"

    # Case 4: in-place diagonal update with real buffer donation.
    donate_fn = jax.jit(custom_matrix_update_diagonal_in_place, donate_argnums=(1,))
    off1_donated = off1 + 0.0  # fresh buffer so off1 stays valid for the check
    out3 = jax.block_until_ready(donate_fn(fd1, off1_donated))
    assert jnp.allclose(out3, ref1, atol=1e-6), "mismatch (in-place, L=256)"

    print("KERNEL_OK")
</pallas_src>

<mosaic_0001>
module attributes {stable_mosaic.version = 11 : i64} {
  func.func @_row_blend_kernel(%arg0: i32, %arg1: memref<1x256xf32, #tpu.memory_space<vmem>>, %arg2: memref<32x256xf32, #tpu.memory_space<vmem>>, %arg3: memref<32x256xf32, #tpu.memory_space<vmem>>) attributes {dimension_semantics = [#tpu.dimension_semantics<parallel>], iteration_bounds = array<i64: 8>, scalar_prefetch = 0 : i64, scratch_operands = 0 : i64, tpu.core_type = #tpu.core_type<tc>, window_params = [{pipeline_mode = #tpu.pipeline_mode<synchronous>, transform_indices = @transform_0, window_bounds = array<i64: 1, 256>}, {transform_indices = @transform_1, window_bounds = array<i64: 32, 256>}, {transform_indices = @transform_2, window_bounds = array<i64: 32, 256>}]} {
    %c32_i32 = arith.constant 32 : i32
    %0 = arith.muli %arg0, %c32_i32 : i32
    %1 = tpu.iota {dimensions = array<i32: 0>} : vector<32x256xi32>
    %2 = vector.broadcast %0 : i32 to vector<32x256xi32>
    %3 = arith.addi %1, %2 : vector<32x256xi32>
    %4 = tpu.iota {dimensions = array<i32: 1>} : vector<32x256xi32>
    %5 = arith.cmpi eq, %3, %4 : vector<32x256xi32>
    %c0 = arith.constant 0 : index
    %c0_0 = arith.constant 0 : index
    %6 = vector.load %arg1[%c0, %c0_0] : memref<1x256xf32, #tpu.memory_space<vmem>>, vector<1x256xf32>
    %c0_1 = arith.constant 0 : index
    %c0_2 = arith.constant 0 : index
    %7 = vector.load %arg2[%c0_1, %c0_2] : memref<32x256xf32, #tpu.memory_space<vmem>>, vector<32x256xf32>
    %8 = vector.shape_cast %6 : vector<1x256xf32> to vector<1x256xf32>
    %9 = vector.broadcast %8 : vector<1x256xf32> to vector<32x256xf32>
    %10 = arith.select %5, %9, %7 : vector<32x256xi1>, vector<32x256xf32>
    %c0_3 = arith.constant 0 : index
    %c0_4 = arith.constant 0 : index
    %11 = vector.load %arg3[%c0_3, %c0_4] : memref<32x256xf32, #tpu.memory_space<vmem>>, vector<32x256xf32>
    tpu.vector_store %arg3[%c0_3, %c0_4], %10 {strides = array<i32>} : memref<32x256xf32, #tpu.memory_space<vmem>>, vector<32x256xf32>,
    return
  }
  func.func @transform_0(%arg0: i32) -> (i32, i32) {
    %c0_i32 = arith.constant 0 : i32
    %c0_i32_0 = arith.constant 0 : i32
    %c0_i32_1 = arith.constant 0 : i32
    return %c0_i32, %c0_i32_0 : i32, i32
  }
  func.func @transform_1(%arg0: i32) -> (i32, i32) {
    %c0_i32 = arith.constant 0 : i32
    %c0_i32_0 = arith.constant 0 : i32
    return %arg0, %c0_i32 : i32, i32
  }
  func.func @transform_2(%arg0: i32) -> (i32, i32) {
    %c0_i32 = arith.constant 0 : i32
    %c0_i32_0 = arith.constant 0 : i32
    return %arg0, %c0_i32 : i32, i32
  }
}

</mosaic_0001>

<llo_original>
// kernel: tpu_custom_call.1
$region0: #{tpu_custom_call.1}
  #allocation0 [shape = 'u32[]', space=smem, size = 0x4, offset = 0x4, fixed_abs, tag = 'smem constant byte address 0x4 - core index']
  #allocation1 [shape = 'u32[144,128]{1,0:T(1,128)}', space=vmem, size = 0x12000, scoped, tag = 'internal scratch']
  %s0 = inlined_call_operand.hbm [shape: f32[1,256], index: 0, kind: input, shape index: {}]
  %s1 = inlined_call_operand.hbm [shape: f32[256,256], index: 1, kind: input, shape index: {}]
  %s2 = inlined_call_operand.hbm [shape: f32[256,256], index: 2, kind: output, shape index: {}]
  %s3 = sld [smem:[#allocation0]]
  $region49: #{tpu_custom_call.1} parent=0
    _
  %s5 = ssub.s32 1, %s3
  %s6 = scalar_select 0, %s5, %s3
  $region1: #{tpu_custom_call.1} parent=0
    #allocation2 [shape = 'u8[1024]{0}', space=vmem, size = 0x400, scoped, tag = 'input window, operand 0, single buffered']
    #allocation3 [shape = 's32[2]{0}', space=sflag, size = 0x8, scoped, tag = 'scoped memory for tpu_custom_call.1']
    #allocation4 [shape = 's32[2]{0}', space=sflag, size = 0x8, scoped, tag = 'scoped memory for tpu_custom_call.1']
    #allocation5 [shape = 'u8[65536]{0}', space=vmem, size = 0x10000, scoped, tag = 'input window, operand 1']
    #allocation6 [shape = 's32[2]{0}', space=sflag, size = 0x8, scoped, tag = 'scoped memory for tpu_custom_call.1']
    #allocation7 [shape = 'u8[65536]{0}', space=vmem, size = 0x10000, scoped, tag = 'output window, operand 0']
    %7 = vsyncpa [#allocation3], 0
    %8 = vsyncpa [#allocation6], 0
    %s9 = scalar_lea.sflag [#allocation6], 1
    %10 = vsyncpa %s9, 0
    %11 = vsyncpa [#allocation4], 0
    %s12 = scalar_lea.sflag [#allocation4], 1
    %13 = vsyncpa %s12, 0
    loop: start=0, step=1, limit=10
    $region2: #{tpu_custom_call.1} parent=1 // loop_pre_header
      _
    $region3: #{tpu_custom_call.1} parent=1 // loop_header
      %s15 = sphi 0, %s19
      %p16 = scmp.ge.s32.totalorder %s15, 10
      %s23 = sphi 0, %s23
      %s25 = sphi 0, %s23
      %s26 = sphi 0, %s25
      %s40 = sphi 0, %s26
      %s46 = sphi 0, %s48
      %s49 = sphi 0, %s46
      %s50 = sphi 0, %s49
      %s66 = sphi 0, %s50
      %s72 = sphi 0, %s74
      %s75 = sphi 0, %s72
      %s76 = sphi 0, %s75
      %s92 = sphi 0, %s76
    $region4: #{tpu_custom_call.1} parent=1 // loop_header_branch
      %18 = sbr.rel (%p16) target = $region8
    $region5: #{tpu_custom_call.1} parent=1 // loop_body
      %s20 = ssub.s32 %s15, 1
      %s21 = ssub.s32 %s15, 2
      %s22 = sadd.s32 %s15, 1
      %s24 = sadd.s32 %s23, 1
      %p27 = scmp.eq.s32.totalorder %s15, 7
      %p28 = scmp.ne.s32.totalorder %s23, %s25
      %p29 = scmp.eq.s32.totalorder %s15, 0
      %p30 = por %p28, %p29
      %p31 = scmp.ne.s32.totalorder %s23, %s25
      %p32 = scmp.eq.s32.totalorder %s20, 7
      %p33 = por %p31, %p32
      %p34 = scmp.ne.s32.totalorder %s25, %s26
      %p35 = scmp.eq.s32.totalorder %s20, 0
      %p36 = por %p34, %p35
      %p37 = scmp.ne.s32.totalorder %s25, %s26
      %p38 = scmp.eq.s32.totalorder %s21, 7
      %p39 = por %p37, %p38
      %p41 = scmp.ne.s32.totalorder %s26, %s40
      %p42 = scmp.eq.s32.totalorder %s21, 0
      %p43 = por %p41, %p42
      %s44 = ssub.s32 %s15, %s22
      %p45 = scmp.eq.s32.totalorder %s44, 0
      %s47 = sadd.s32 %s46, 1
      %s48 = scalar_select %p45, %s46, %s47
      %p51 = pneg %p45
      %p52 = scmp.eq.s32.totalorder %s15, 7
      %p53 = por %p51, %p52
      %p54 = scmp.ne.s32.totalorder %s46, %s49
      %p55 = scmp.eq.s32.totalorder %s15, 0
      %p56 = por %p54, %p55
      %p57 = scmp.ne.s32.totalorder %s46, %s49
      %p58 = scmp.eq.s32.totalorder %s20, 7
      %p59 = por %p57, %p58
      %p60 = scmp.ne.s32.totalorder %s49, %s50
      %p61 = scmp.eq.s32.totalorder %s20, 0
      %p62 = por %p60, %p61
      %p63 = scmp.ne.s32.totalorder %s49, %s50
      %p64 = scmp.eq.s32.totalorder %s21, 7
      %p65 = por %p63, %p64
      %p67 = scmp.ne.s32.totalorder %s50, %s66
      %p68 = scmp.eq.s32.totalorder %s21, 0
      %p69 = por %p67, %p68
      %s70 = ssub.s32 %s15, %s22
      %p71 = scmp.eq.s32.totalorder %s70, 0
      %s73 = sadd.s32 %s72, 1
      %s74 = scalar_select %p71, %s72, %s73
      %p77 = pneg %p71
      %p78 = scmp.eq.s32.totalorder %s15, 7
      %p79 = por %p77, %p78
      %p80 = scmp.ne.s32.totalorder %s72, %s75
      %p81 = scmp.eq.s32.totalorder %s15, 0
      %p82 = por %p80, %p81
      %p83 = scmp.ne.s32.totalorder %s72, %s75
      %p84 = scmp.eq.s32.totalorder %s20, 7
      %p85 = por %p83, %p84
      %p86 = scmp.ne.s32.totalorder %s75, %s76
      %p87 = scmp.eq.s32.totalorder %s20, 0
      %p88 = por %p86, %p87
      %p89 = scmp.ne.s32.totalorder %s75, %s76
      %p90 = scmp.eq.s32.totalorder %s21, 7
      %p91 = por %p89, %p90
      %p93 = scmp.ne.s32.totalorder %s76, %s92
      %p94 = scmp.eq.s32.totalorder %s21, 0
      %p95 = por %p93, %p94
      %p96 = scmp.le.s32.totalorder 1, %s15
      %p97 = scmp.lt.s32.totalorder %s15, 9
      %p98 = pnand %p96, %p97
      %p99 = pneg %p98
      // Predicated region
      $region9: #{tpu_custom_call.1} parent=5 // pred_check
        _
      $region10: #{tpu_custom_call.1} parent=5 // pred_check_branch
        %101 = sbr.rel (%p98) target = $region12
      $region11: #{tpu_custom_call.1} parent=5 // pred_region
        %s102 = ssub.s32 %s15, 1
        // Predicated region
        $region13: #{tpu_custom_call.1} parent=11 // pred_check
          %p103 = pneg %p36
        $region14: #{tpu_custom_call.1} parent=11 // pred_check_branch
          %105 = sbr.rel (%p103) target = $region16
        $region15: #{tpu_custom_call.1} parent=11 // pred_region
          %s107 = ssub.s32 32, 32
          %108 = vsyncadd [#allocation3], %s107
          %s110 = sshll.u32 [#allocation2], 4
          %s111 = int_to_ptr.vmem [resolvable:$true] %s110
          %113 = dma.hbm_to_vmem [thread:$0]  %s0, 32, %s111, [#allocation3]
        $region16: #{tpu_custom_call.1} parent=11 // pred_fallthru
          _
      $region12: #{tpu_custom_call.1} parent=5 // pred_fallthru
        _
      %p114 = scmp.lt.s32.totalorder %s15, 8
      // Predicated region
      $region17: #{tpu_custom_call.1} parent=5 // pred_check
        %p115 = pneg %p114
      $region18: #{tpu_custom_call.1} parent=5 // pred_check_branch
        %117 = sbr.rel (%p115) target = $region20
      $region19: #{tpu_custom_call.1} parent=5 // pred_region
        // Predicated region
        $region21: #{tpu_custom_call.1} parent=19 // pred_check
          %p118 = pneg %p56
        $region22: #{tpu_custom_call.1} parent=19 // pred_check_branch
          %120 = sbr.rel (%p118) target = $region24
        $region23: #{tpu_custom_call.1} parent=19 // pred_region
          %s121 = sand.u32 %s46, 1
          %s122 = scalar_lea.sflag [#allocation6], %s121
          %s123 = sand.u32 %s46, 1
          %s124 = smul.addr %s123, 64
          %s125 = scalar_lea.vmem [#allocation5], %s124
          %s126 = smul.u32 4, %s15
          %s128 = ssub.s32 1024, 1024
          %129 = vsyncadd %s122, %s128
          %s130 = smul.addr %s126, 2
          %s131 = smul.addr %s130, 128
          %s132 = scalar_lea.hbm %s1, %s131
          %s133 = sshll.u32 %s125, 4
          %s134 = int_to_ptr.vmem [resolvable:$true] %s133
          %139 = dma.hbm_to_vmem [thread:$0]  %s132, 1024, %s134, %s122, 256, 256, 16
        $region24: #{tpu_custom_call.1} parent=19 // pred_fallthru
          _
      $region20: #{tpu_custom_call.1} parent=5 // pred_fallthru
        _
      %p140 = scmp.le.s32.totalorder 1, %s15
      %p141 = scmp.lt.s32.totalorder %s15, 9
      %p142 = pnand %p140, %p141
      %p143 = pneg %p142
      // Predicated region
      $region25: #{tpu_custom_call.1} parent=5 // pred_check
        _
      $region26: #{tpu_custom_call.1} parent=5 // pred_check_branch
        %145 = sbr.rel (%p142) target = $region28
      $region27: #{tpu_custom_call.1} parent=5 // pred_region
        %s146 = ssub.s32 %s15, 1
        // Predicated region
        $region29: #{tpu_custom_call.1} parent=27 // pred_check
          %p147 = pneg %p36
        $region30: #{tpu_custom_call.1} parent=27 // pred_check_branch
          %149 = sbr.rel (%p147) target = $region32
        $region31: #{tpu_custom_call.1} parent=27 // pred_region
          %150 = dma.done [#allocation3], 32
        $region32: #{tpu_custom_call.1} parent=27 // pred_fallthru
          _
        %s151 = sand.u32 %s49, 1
        %s152 = scalar_lea.sflag [#allocation6], %s151
        %s153 = sand.u32 %s49, 1
        %s154 = smul.addr %s153, 64
        %s155 = scalar_lea.vmem [#allocation5], %s154
        // Predicated region
        $region33: #{tpu_custom_call.1} parent=27 // pred_check
          %p156 = pneg %p62
        $region34: #{tpu_custom_call.1} parent=27 // pred_check_branch
          %158 = sbr.rel (%p156) target = $region36
        $region35: #{tpu_custom_call.1} parent=27 // pred_region
          %159 = dma.done %s152, 1024
        $region36: #{tpu_custom_call.1} parent=27 // pred_fallthru
          _
        %p160 = pneg %p36
        %p161 = pneg %p33
        %s162 = sand.u32 %s49, 1
        %s163 = scalar_lea.sflag [#allocation6], %s162
        %s164 = sand.u32 %s49, 1
        %s165 = smul.addr %s164, 64
        %s166 = scalar_lea.vmem [#allocation5], %s165
        %p167 = pneg %p62
        %p168 = pneg %p59
        %p169 = pneg %p88
        %p170 = pneg %p85
        %s171 = sand.u32 %s75, 1
        %s172 = scalar_lea.sflag [#allocation4], %s171
        %s173 = sand.u32 %s75, 1
        %s174 = smul.addr %s173, 64
        %s175 = scalar_lea.vmem [#allocation7], %s174
        %s176 = smul.u32 4, %s20
        %s177 = smul.u32 4, %s20
        %s178 = smul.u32 %s20, 32
        %v179 = vlaneseq
        %v180 = vshrl.u32 %v179, 7
        %v181 = vadd.s32 %v180, 8
        %v182 = vadd.s32 %v180, 16
        %v183 = vadd.s32 %v180, 24
        %v184 = vstv %s178
        %v185 = vadd.s32 %v180, %v184
        %v186 = vadd.s32 %v181, %v184
        %v187 = vadd.s32 %v182, %v184
        %v188 = vadd.s32 %v183, %v184
        %v189 = vlaneseq
        %v190 = vand.u32 %v189, 127
        %v191 = vadd.s32 %v190, 128
        %vm192 = vcmp.eq.s32.totalorder %v185, %v190
        %vm193 = vcmp.eq.s32.totalorder %v185, %v191
        %vm194 = vcmp.eq.s32.totalorder %v186, %v190
        %vm195 = vcmp.eq.s32.totalorder %v186, %v191
        %vm196 = vcmp.eq.s32.totalorder %v187, %v190
        %vm197 = vcmp.eq.s32.totalorder %v187, %v191
        %vm198 = vcmp.eq.s32.totalorder %v188, %v190
        %vm199 = vcmp.eq.s32.totalorder %v188, %v191
        %v200 = vld [vmem:[#allocation2] sm:$0x3]
        %v201 = vld [vmem:[%s155] sm:$0xff]
        %v202 = vld [vmem:[%s155 + $0x8] sm:$0xff]
        %v203 = vld [vmem:[%s155 + $0x10] sm:$0xff]
        %v204 = vld [vmem:[%s155 + $0x18] sm:$0xff]
        %v205 = vld [vmem:[%s155 + $0x20] sm:$0xff]
        %v206 = vld [vmem:[%s155 + $0x28] sm:$0xff]
        %v207 = vld [vmem:[%s155 + $0x30] sm:$0xff]
        %v208 = vld [vmem:[%s155 + $0x38] sm:$0xff]
        %v210 = vlaneseq
        %v211 = vshrl.u32 %v210, 7
        %v212 = vsub.s32 0, %v211
        %v213 = vrot.slane %v200, %v212
        %v214 = vlaneseq
        %v215 = vshrl.u32 %v214, 7
        %v216 = vsub.s32 1, %v215
        %v217 = vrot.slane %v200, %v216
        %v220 = vsel %vm192, %v213, %v201
        %v221 = vsel %vm193, %v217, %v202
        %v222 = vsel %vm194, %v213, %v203
        %v223 = vsel %vm195, %v217, %v204
        %v224 = vsel %vm196, %v213, %v205
        %v225 = vsel %vm197, %v217, %v206
        %v226 = vsel %vm198, %v213, %v207
        %v227 = vsel %vm199, %v217, %v208
        %228 = vst [vmem:[%s175] sm:$0xff] %v220
        %229 = vst [vmem:[%s175 + $0x8] sm:$0xff] %v221
        %230 = vst [vmem:[%s175 + $0x10] sm:$0xff] %v222
        %231 = vst [vmem:[%s175 + $0x18] sm:$0xff] %v223
        %232 = vst [vmem:[%s175 + $0x20] sm:$0xff] %v224
        %233 = vst [vmem:[%s175 + $0x28] sm:$0xff] %v225
        %234 = vst [vmem:[%s175 + $0x30] sm:$0xff] %v226
        %235 = vst [vmem:[%s175 + $0x38] sm:$0xff] %v227
        %s236 = sand.u32 %s75, 1
        %s237 = scalar_lea.sflag [#allocation4], %s236
        %s238 = sand.u32 %s75, 1
        %s239 = smul.addr %s238, 64
        %s240 = scalar_lea.vmem [#allocation7], %s239
        // Predicated region
        $region37: #{tpu_custom_call.1} parent=27 // pred_check
          %p241 = pneg %p85
        $region38: #{tpu_custom_call.1} parent=27 // pred_check_branch
          %243 = sbr.rel (%p241) target = $region40
        $region39: #{tpu_custom_call.1} parent=27 // pred_region
          %s244 = smul.u32 4, %s20
          %s246 = ssub.s32 1024, 1024
          %247 = vsyncadd %s237, %s246
          %s248 = smul.addr %s244, 2
          %s249 = smul.addr %s248, 128
          %s250 = scalar_lea.hbm %s2, %s249
          %s251 = sshll.u32 %s240, 4
          %s252 = int_to_ptr.vmem [resolvable:$true] %s251
          %257 = dma.vmem_to_hbm [thread:$0]  %s252, 1024, %s250, %s237, 256, 256, 16
        $region40: #{tpu_custom_call.1} parent=27 // pred_fallthru
          _
      $region28: #{tpu_custom_call.1} parent=5 // pred_fallthru
        _
      %p258 = scmp.le.s32.totalorder 2, %s15
      // Predicated region
      $region41: #{tpu_custom_call.1} parent=5 // pred_check
        %p259 = pneg %p258
      $region42: #{tpu_custom_call.1} parent=5 // pred_check_branch
        %261 = sbr.rel (%p259) target = $region44
      $region43: #{tpu_custom_call.1} parent=5 // pred_region
        %s262 = ssub.s32 %s15, 2
        // Predicated region
        $region45: #{tpu_custom_call.1} parent=43 // pred_check
          %p263 = pneg %p91
        $region46: #{tpu_custom_call.1} parent=43 // pred_check_branch
          %265 = sbr.rel (%p263) target = $region48
        $region47: #{tpu_custom_call.1} parent=43 // pred_region
          %s266 = sand.u32 %s76, 1
          %s267 = scalar_lea.sflag [#allocation4], %s266
          %s268 = sand.u32 %s76, 1
          %s269 = smul.addr %s268, 64
          %s270 = scalar_lea.vmem [#allocation7], %s269
          %271 = dma.done %s267, 1024
        $region48: #{tpu_custom_call.1} parent=43 // pred_fallthru
          _
      $region44: #{tpu_custom_call.1} parent=5 // pred_fallthru
        _
    $region6: #{tpu_custom_call.1} parent=1 // loop_footer
      %s19 = sadd.s32 1, %s15
    $region7: #{tpu_custom_call.1} parent=1 // loop_footer_branch
      %14 = sbr.rel target = $region3
    $region8: #{tpu_custom_call.1} parent=1 // loop_exit
      _
    %272 = vsyncpa [#allocation3], 1
    %s273 = scalar_lea.sflag [#allocation3], 1
    %274 = vsyncpa %s273, 1
    %275 = vsyncpa [#allocation6], 1
    %s276 = scalar_lea.sflag [#allocation6], 1
    %277 = vsyncpa %s276, 1
    %278 = vsyncpa [#allocation4], 1
    %s279 = scalar_lea.sflag [#allocation4], 1
    %280 = vsyncpa %s279, 1

</llo_original>
